<compile_context>
chip_gen: v6e
topology: v6e:2x2x1
jax: 0.10.0
libtpu: 0.0.40
codegen_flags: <defaults>
</compile_context>

<pallas_src>
import jax
import jax.numpy as jnp
from jax.experimental import pallas as pl
from jax.experimental.pallas import tpu as pltpu

# Model constants (from ThreeSpecies_LV.__init__)
ALPHA = 0.5
BETA = 1.5
GAMMA = 3.0
DELTA = 1.0
L = 1.0  # unused in forward

_LANE = 128       # TPU lane width
_TN_MAX = 8192    # lanes per block when gridding large batches (4*8192*4B = 128 KiB)


def _lv_kernel(y_ref, o_ref):
    # y_ref: (4, TN) f32 tile; rows are [S1, S2, S3, T], lanes are batch entries.
    y = y_ref[...]
    S1 = y[0:1, :]
    S2 = y[1:2, :]
    S3 = y[2:3, :]
    # T = y[3:4, :]  # unused in the dynamics

    b12 = BETA * (S1 * S2)       # shared term, computed once
    g23 = GAMMA * (S2 * S3)      # shared term, computed once

    dS1 = ALPHA * S1 - b12
    dS2 = b12 - g23
    dS3 = g23 - DELTA * S3
    dT = jnp.ones_like(S1)       # torch.tensor([1.0]) broadcast per batch entry

    # Single unmasked full-tile store (no per-row masked vst.msk).
    o_ref[...] = jnp.concatenate([dS1, dS2, dS3, dT], axis=0)


def three_species_lv_forward(t, y):
    """JAX/Pallas equivalent of ThreeSpecies_LV.forward(t, y).

    `t` is unused (kept for ODE-solver signature parity).
    `y` may be any shape with a total size divisible by 4; it is viewed as (-1, 4).
    Returns an (N, 4) float32 array of time derivatives.
    """
    del t
    y2 = jnp.asarray(y, dtype=jnp.float32).reshape(-1, 4)
    n = y2.shape[0]

    # Lane-dense layout: species on sublanes, batch on lanes.
    y_t = y2.T                                        # (4, N)

    # Round batch up to a multiple of 128 lanes; pick block width.
    n128 = ((n + _LANE - 1) // _LANE) * _LANE
    if n128 <= _TN_MAX:
        tn = n128
        n_pad = n128
    else:
        tn = _TN_MAX
        n_pad = ((n + tn - 1) // tn) * tn

    if n_pad != n:
        y_t = jnp.pad(y_t, ((0, 0), (0, n_pad - n)))  # zero-pad lanes (harmless)

    grid = (n_pad // tn,)

    out_t = pl.pallas_call(
        _lv_kernel,
        out_shape=jax.ShapeDtypeStruct((4, n_pad), jnp.float32),
        grid=grid,
        in_specs=[pl.BlockSpec((4, tn), lambda i: (0, i))],
        out_specs=pl.BlockSpec((4, tn), lambda i: (0, i)),
        compiler_params=pltpu.CompilerParams(
            dimension_semantics=("parallel",)),     # v7x: shard batch over both TCs
    )(y_t)

    return out_t[:, :n].T                             # back to (N, 4)


def _reference_forward(t, y):
    del t
    y2 = jnp.asarray(y, dtype=jnp.float32).reshape(-1, 4)
    S1, S2, S3 = y2[:, 0], y2[:, 1], y2[:, 2]
    dS1 = ALPHA * S1 - BETA * S1 * S2
    dS2 = BETA * S1 * S2 - GAMMA * S2 * S3
    dS3 = GAMMA * S2 * S3 - DELTA * S3
    dT = jnp.ones_like(S1)
    return jnp.stack([dS1, dS2, dS3, dT], axis=1)


if __name__ == "__main__":
    key = jax.random.PRNGKey(0)
    t = jnp.float32(0.0)

    # Small batch: N = 8 rows of [S1, S2, S3, T] (typical ODE-RHS shape).
    y_small = jax.random.uniform(key, (8, 4), dtype=jnp.float32,
                                 minval=0.1, maxval=2.0)
    out_small = jax.block_until_ready(three_species_lv_forward(t, y_small))
    ref_small = _reference_forward(t, y_small)
    assert out_small.shape == (8, 4)
    assert out_small.dtype == jnp.float32
    assert jnp.allclose(out_small, ref_small, atol=1e-6, rtol=1e-6)

    # Larger batch: exercises the padded / pipelined path (non-multiple of 128).
    key2 = jax.random.PRNGKey(0)
    y_big = jax.random.uniform(key2, (3000, 4), dtype=jnp.float32,
                               minval=0.1, maxval=2.0)
    out_big = jax.block_until_ready(three_species_lv_forward(t, y_big))
    ref_big = _reference_forward(t, y_big)
    assert out_big.shape == (3000, 4)
    assert jnp.allclose(out_big, ref_big, atol=1e-6, rtol=1e-6)

    # Very large batch: exercises the multi-block gridded path (grid > 1).
    key3 = jax.random.PRNGKey(0)
    y_huge = jax.random.uniform(key3, (20000, 4), dtype=jnp.float32,
                                minval=0.1, maxval=2.0)
    out_huge = jax.block_until_ready(three_species_lv_forward(t, y_huge))
    ref_huge = _reference_forward(t, y_huge)
    assert out_huge.shape == (20000, 4)
    assert jnp.allclose(out_huge, ref_huge, atol=1e-6, rtol=1e-6)

    print("KERNEL_OK")
</pallas_src>

<mosaic_0001>
module attributes {stable_mosaic.version = 11 : i64} {
  func.func @_lv_kernel(%arg0: i32, %arg1: memref<4x128xf32, #tpu.memory_space<vmem>>, %arg2: memref<4x128xf32, #tpu.memory_space<vmem>>) attributes {dimension_semantics = [#tpu.dimension_semantics<parallel>], iteration_bounds = array<i64: 1>, scalar_prefetch = 0 : i64, scratch_operands = 0 : i64, tpu.core_type = #tpu.core_type<tc>, window_params = [{transform_indices = @transform_0, window_bounds = array<i64: 4, 128>}, {transform_indices = @transform_1, window_bounds = array<i64: 4, 128>}]} {
    %c0 = arith.constant 0 : index
    %c0_0 = arith.constant 0 : index
    %0 = vector.load %arg1[%c0, %c0_0] : memref<4x128xf32, #tpu.memory_space<vmem>>, vector<4x128xf32>
    %1 = vector.extract_strided_slice %0 {offsets = [0, 0], sizes = [1, 128], strides = [1, 1]} : vector<4x128xf32> to vector<1x128xf32>
    %2 = vector.extract_strided_slice %0 {offsets = [1, 0], sizes = [1, 128], strides = [1, 1]} : vector<4x128xf32> to vector<1x128xf32>
    %3 = vector.extract_strided_slice %0 {offsets = [2, 0], sizes = [1, 128], strides = [1, 1]} : vector<4x128xf32> to vector<1x128xf32>
    %4 = arith.mulf %1, %2 : vector<1x128xf32>
    %cst = arith.constant 1.500000e+00 : f32
    %5 = vector.broadcast %cst : f32 to vector<1x128xf32>
    %6 = arith.mulf %5, %4 : vector<1x128xf32>
    %7 = arith.mulf %2, %3 : vector<1x128xf32>
    %cst_1 = arith.constant 3.000000e+00 : f32
    %8 = vector.broadcast %cst_1 : f32 to vector<1x128xf32>
    %9 = arith.mulf %8, %7 : vector<1x128xf32>
    %cst_2 = arith.constant 5.000000e-01 : f32
    %10 = vector.broadcast %cst_2 : f32 to vector<1x128xf32>
    %11 = arith.mulf %10, %1 : vector<1x128xf32>
    %12 = arith.subf %11, %6 : vector<1x128xf32>
    %13 = arith.subf %6, %9 : vector<1x128xf32>
    %cst_3 = arith.constant 1.000000e+00 : f32
    %14 = vector.broadcast %cst_3 : f32 to vector<1x128xf32>
    %15 = arith.mulf %14, %3 : vector<1x128xf32>
    %16 = arith.subf %9, %15 : vector<1x128xf32>
    %cst_4 = arith.constant 1.000000e+00 : f32
    %17 = vector.broadcast %cst_4 : f32 to vector<1x128xf32>
    %18 = tpu.concatenate %12, %13, %16, %17 in 0 : vector<1x128xf32>, vector<1x128xf32>, vector<1x128xf32>, vector<1x128xf32> -> vector<4x128xf32>
    %c0_5 = arith.constant 0 : index
    %c0_6 = arith.constant 0 : index
    %19 = vector.load %arg2[%c0_5, %c0_6] : memref<4x128xf32, #tpu.memory_space<vmem>>, vector<4x128xf32>
    tpu.vector_store %arg2[%c0_5, %c0_6], %18 {strides = array<i32>} : memref<4x128xf32, #tpu.memory_space<vmem>>, vector<4x128xf32>,
    return
  }
  func.func @transform_0(%arg0: i32) -> (i32, i32) {
    %c0_i32 = arith.constant 0 : i32
    %c0_i32_0 = arith.constant 0 : i32
    return %c0_i32, %arg0 : i32, i32
  }
  func.func @transform_1(%arg0: i32) -> (i32, i32) {
    %c0_i32 = arith.constant 0 : i32
    %c0_i32_0 = arith.constant 0 : i32
    return %c0_i32, %arg0 : i32, i32
  }
}

</mosaic_0001>

<llo_original>
// kernel: tpu_custom_call.1
$region0: #{tpu_custom_call.1}
  #allocation0 [shape = 'u32[]', space=smem, size = 0x4, offset = 0x4, fixed_abs, tag = 'smem constant byte address 0x4 - core index']
  #allocation1 [shape = 'u32[144,128]{1,0:T(1,128)}', space=vmem, size = 0x12000, scoped, tag = 'internal scratch']
  %s0 = inlined_call_operand.hbm [shape: f32[4,128], index: 0, kind: input, shape index: {}]
  %s1 = inlined_call_operand.hbm [shape: f32[4,128], index: 1, kind: output, shape index: {}]
  %s2 = sld [smem:[#allocation0]]
  $region18: #{tpu_custom_call.1} parent=0
    _
  %s4 = ssub.s32 1, %s2
  %s5 = scalar_select 0, %s4, %s2
  $region1: #{tpu_custom_call.1} parent=0
    #allocation2 [shape = 'u8[2048]{0}', space=vmem, size = 0x800, scoped, tag = 'input window, operand 0, single buffered']
    #allocation3 [shape = 's32[1]{0}', space=sflag, size = 0x4, scoped, tag = 'scoped memory for tpu_custom_call.1']
    #allocation4 [shape = 's32[1]{0}', space=sflag, size = 0x4, scoped, tag = 'scoped memory for tpu_custom_call.1']
    #allocation5 [shape = 'u8[2048]{0}', space=vmem, size = 0x800, scoped, tag = 'output window, operand 0, single buffered']
    %6 = vsyncpa [#allocation3], 0
    %7 = vsyncpa [#allocation4], 0
    // Predicated region
    $region2: #{tpu_custom_call.1} parent=1 // pred_check
      _
    $region3: #{tpu_custom_call.1} parent=1 // pred_check_branch
      %9 = sbr.rel (0) target = $region5
    $region4: #{tpu_custom_call.1} parent=1 // pred_region
      %s11 = ssub.s32 64, 64
      %12 = vsyncadd [#allocation3], %s11
      %s14 = sshll.u32 [#allocation2], 4
      %s15 = int_to_ptr.vmem [resolvable:$true] %s14
      %17 = dma.hbm_to_vmem [thread:$0]  %s0, 64, %s15, [#allocation3]
    $region5: #{tpu_custom_call.1} parent=1 // pred_fallthru
      _
    // Predicated region
    $region6: #{tpu_custom_call.1} parent=1 // pred_check
      _
    $region7: #{tpu_custom_call.1} parent=1 // pred_check_branch
      %19 = sbr.rel (0) target = $region9
    $region8: #{tpu_custom_call.1} parent=1 // pred_region
      %20 = dma.done [#allocation3], 64
    $region9: #{tpu_custom_call.1} parent=1 // pred_fallthru
      _
    %v21 = vld [vmem:[#allocation2] sm:$0xf]
    %v23 = vrot.slane %v21, 1
    %v25 = vmul.f32 %v21, %v23
    %v26 = vmul.f32 %v25, 1.5
    %v27 = vmul.f32 %v25, 3.0
    %v28 = vmul.f32 %v21, 0.5
    %v29 = vsub.f32 %v28, %v26
    %v31 = vrot.slane %v27, 1
    %v33 = vsub.f32 %v26, %v31
    %v34 = vsub.f32 %v27, %v23
    %v36 = vrot.slane %v33, 7
    %v39 = vrot.slane %v34, 7
    %vm41 = vcmask 1040384
    %v42 = vsel %vm41, %v29, %v36
    %vm43 = vcmask 1041408
    %v44 = vsel %vm43, %v42, %v39
    %vm45 = vcmask 1042432
    %v46 = vsel %vm45, %v44, 1.0
    %47 = vst [vmem:[#allocation5] sm:$0xf] %v46
    // Predicated region
    $region10: #{tpu_custom_call.1} parent=1 // pred_check
      _
    $region11: #{tpu_custom_call.1} parent=1 // pred_check_branch
      %49 = sbr.rel (0) target = $region13
    $region12: #{tpu_custom_call.1} parent=1 // pred_region
      %s51 = ssub.s32 64, 64
      %52 = vsyncadd [#allocation4], %s51
      %s54 = sshll.u32 [#allocation5], 4
      %s55 = int_to_ptr.vmem [resolvable:$true] %s54
      %57 = dma.vmem_to_hbm [thread:$0]  %s55, 64, %s1, [#allocation4]
    $region13: #{tpu_custom_call.1} parent=1 // pred_fallthru
      _
    // Predicated region
    $region14: #{tpu_custom_call.1} parent=1 // pred_check
      _
    $region15: #{tpu_custom_call.1} parent=1 // pred_check_branch
      %59 = sbr.rel (0) target = $region17
    $region16: #{tpu_custom_call.1} parent=1 // pred_region
      %60 = dma.done [#allocation4], 64
    $region17: #{tpu_custom_call.1} parent=1 // pred_fallthru
      _
    %61 = vsyncpa [#allocation3], 1
    %62 = vsyncpa [#allocation4], 1

</llo_original>
